<compile_context>
chip_gen: v5e
topology: v5e:2x2
jax: 0.10.0
libtpu: 0.0.40
codegen_flags: <defaults>
</compile_context>

<pallas_src>
import jax
import jax.numpy as jnp
from jax.experimental import pallas as pl
from jax.experimental.pallas import tpu as pltpu


def _concat_dma_kernel(a_hbm, b_hbm, o_hbm, sem):
    # a_hbm: (N, C1*H*W), b_hbm: (N, C2*H*W), o_hbm: (N, (C1+C2)*H*W) -- all HBM.
    c1 = a_hbm.shape[1]
    c2 = b_hbm.shape[1]
    # Two direct HBM->HBM copies into the output's channel slices, issued
    # back-to-back so they overlap, then both waited before the kernel exits.
    cp_a = pltpu.make_async_copy(a_hbm, o_hbm.at[:, pl.ds(0, c1)], sem.at[0])
    cp_b = pltpu.make_async_copy(b_hbm, o_hbm.at[:, pl.ds(c1, c2)], sem.at[1])
    cp_a.start()
    cp_b.start()
    cp_a.wait()
    cp_b.wait()


def concatenation(layer_1: jax.Array, layer_2: jax.Array) -> jax.Array:
    """torch.cat((layer_1, layer_2), dim=1) for NCHW inputs."""
    assert layer_1.dtype == layer_2.dtype
    n1, c1, h1, w1 = layer_1.shape
    n2, c2, h2, w2 = layer_2.shape
    assert (n1, h1, w1) == (n2, h2, w2), "non-concat dims must match"

    fa = c1 * h1 * w1
    fb = c2 * h2 * w2

    # Free layout plumbing: NCHW is contiguous per batch, so the flattened
    # (N, C*H*W) view describes one large contiguous chunk per batch row,
    # and the channel-concat becomes a concat along the (lane-dense) last dim.
    a2d = layer_1.reshape(n1, fa)
    b2d = layer_2.reshape(n1, fb)

    out2d = pl.pallas_call(
        _concat_dma_kernel,
        out_shape=jax.ShapeDtypeStruct((n1, fa + fb), layer_1.dtype),
        in_specs=[
            pl.BlockSpec(memory_space=pl.ANY),  # stay in HBM, no auto-DMA
            pl.BlockSpec(memory_space=pl.ANY),
        ],
        out_specs=pl.BlockSpec(memory_space=pl.ANY),
        scratch_shapes=[pltpu.SemaphoreType.DMA((2,))],
    )(a2d, b2d)

    # Note: on v7x the two copies (or batch halves) could additionally be split
    # across the 2 TensorCores with a size-2 parallel grid; the single-invocation
    # dual-DMA version already saturates HBM bandwidth for this op.
    return out2d.reshape(n1, c1 + c2, h1, w1)


if __name__ == "__main__":
    key = jax.random.PRNGKey(0)
    k1, k2 = jax.random.split(key)

    # Small NCHW shapes consistent with the module's conv-feature inputs.
    layer_1 = jax.random.normal(k1, (2, 4, 16, 16), dtype=jnp.float32)
    layer_2 = jax.random.normal(k2, (2, 4, 16, 16), dtype=jnp.float32)

    out = concatenation(layer_1, layer_2)
    jax.block_until_ready(out)

    ref = jnp.concatenate([layer_1, layer_2], axis=1)
    assert out.shape == ref.shape, (out.shape, ref.shape)
    assert out.dtype == ref.dtype
    assert jnp.array_equal(out, ref), "mismatch vs jnp.concatenate reference"

    print("KERNEL_OK")
</pallas_src>

<mosaic_0001>
module attributes {stable_mosaic.version = 11 : i64} {
  func.func @_concat_dma_kernel(%arg0: memref<2x1024xf32, #tpu.memory_space<any>>, %arg1: memref<2x1024xf32, #tpu.memory_space<any>>, %arg2: memref<2x2048xf32, #tpu.memory_space<any>>, %arg3: memref<2x!tpu.dma_semaphore, #tpu.memory_space<semaphore_mem>>) attributes {dimension_semantics = [], scalar_prefetch = 0 : i64, scratch_operands = 1 : i64, tpu.core_type = #tpu.core_type<tc>} {
    %c0_i32 = arith.constant 0 : i32
    %c0_i32_0 = arith.constant 0 : i32
    %c0_i32_1 = arith.constant 0 : i32
    %0 = tpu.memref_slice %arg2[%c0_i32_0, %c0_i32_1] : memref<2x2048xf32, #tpu.memory_space<any>> -> memref<2x1024xf32, #tpu.memory_space<any>>
    %1 = tpu.memref_slice %arg3[%c0_i32] : memref<2x!tpu.dma_semaphore, #tpu.memory_space<semaphore_mem>> -> memref<1x!tpu.dma_semaphore, #tpu.memory_space<semaphore_mem>>
    %2 = tpu.memref_squeeze %1 : memref<1x!tpu.dma_semaphore, #tpu.memory_space<semaphore_mem>> -> memref<!tpu.dma_semaphore, #tpu.memory_space<semaphore_mem>>
    tpu.enqueue_dma source(%arg0 : memref<2x1024xf32, #tpu.memory_space<any>>) target(%0 : memref<2x1024xf32, #tpu.memory_space<any>>) target_semaphore(%2 : memref<!tpu.dma_semaphore, #tpu.memory_space<semaphore_mem>>)
    %c1_i32 = arith.constant 1 : i32
    %c0_i32_2 = arith.constant 0 : i32
    %c1024_i32 = arith.constant 1024 : i32
    %3 = tpu.memref_slice %arg2[%c0_i32_2, %c1024_i32] : memref<2x2048xf32, #tpu.memory_space<any>> -> memref<2x1024xf32, #tpu.memory_space<any>>
    %4 = tpu.memref_slice %arg3[%c1_i32] : memref<2x!tpu.dma_semaphore, #tpu.memory_space<semaphore_mem>> -> memref<1x!tpu.dma_semaphore, #tpu.memory_space<semaphore_mem>>
    %5 = tpu.memref_squeeze %4 : memref<1x!tpu.dma_semaphore, #tpu.memory_space<semaphore_mem>> -> memref<!tpu.dma_semaphore, #tpu.memory_space<semaphore_mem>>
    tpu.enqueue_dma source(%arg1 : memref<2x1024xf32, #tpu.memory_space<any>>) target(%3 : memref<2x1024xf32, #tpu.memory_space<any>>) target_semaphore(%5 : memref<!tpu.dma_semaphore, #tpu.memory_space<semaphore_mem>>)
    %c0_i32_3 = arith.constant 0 : i32
    %c0_i32_4 = arith.constant 0 : i32
    %c0_i32_5 = arith.constant 0 : i32
    %6 = tpu.memref_slice %arg2[%c0_i32_4, %c0_i32_5] : memref<2x2048xf32, #tpu.memory_space<any>> -> memref<2x1024xf32, #tpu.memory_space<any>>
    %7 = tpu.memref_slice %arg3[%c0_i32_3] : memref<2x!tpu.dma_semaphore, #tpu.memory_space<semaphore_mem>> -> memref<1x!tpu.dma_semaphore, #tpu.memory_space<semaphore_mem>>
    %8 = tpu.memref_squeeze %7 : memref<1x!tpu.dma_semaphore, #tpu.memory_space<semaphore_mem>> -> memref<!tpu.dma_semaphore, #tpu.memory_space<semaphore_mem>>
    tpu.wait_dma2 semaphore(%8 : memref<!tpu.dma_semaphore, #tpu.memory_space<semaphore_mem>>) src(%arg0 : memref<2x1024xf32, #tpu.memory_space<any>>) dst(%6 : memref<2x1024xf32, #tpu.memory_space<any>>)
    %c1_i32_6 = arith.constant 1 : i32
    %c0_i32_7 = arith.constant 0 : i32
    %c1024_i32_8 = arith.constant 1024 : i32
    %9 = tpu.memref_slice %arg2[%c0_i32_7, %c1024_i32_8] : memref<2x2048xf32, #tpu.memory_space<any>> -> memref<2x1024xf32, #tpu.memory_space<any>>
    %10 = tpu.memref_slice %arg3[%c1_i32_6] : memref<2x!tpu.dma_semaphore, #tpu.memory_space<semaphore_mem>> -> memref<1x!tpu.dma_semaphore, #tpu.memory_space<semaphore_mem>>
    %11 = tpu.memref_squeeze %10 : memref<1x!tpu.dma_semaphore, #tpu.memory_space<semaphore_mem>> -> memref<!tpu.dma_semaphore, #tpu.memory_space<semaphore_mem>>
    tpu.wait_dma2 semaphore(%11 : memref<!tpu.dma_semaphore, #tpu.memory_space<semaphore_mem>>) src(%arg1 : memref<2x1024xf32, #tpu.memory_space<any>>) dst(%9 : memref<2x1024xf32, #tpu.memory_space<any>>)
    return
  }
}

</mosaic_0001>

<llo_original>
// kernel: tpu_custom_call.1
$region0: #{tpu_custom_call.1}
  #allocation0 [shape = 'u32[]', space=smem, size = 0x4, offset = 0x4, fixed_abs, tag = 'smem constant byte address 0x4 - core index']
  #allocation1 [shape = 'u32[72,128]{1,0:T(1,128)}', space=vmem, size = 0x9000, scoped, tag = 'internal scratch']
  #allocation2 [shape = 's32[2]{0}', space=sflag, size = 0x8, scoped, tag = 'scratch operand']
  #allocation3 [shape = 's32[]', space=sflag, size = 0x4, offset = 0, fixed_abs, tag = 'sflag constant byte address 0x0 - dummy sync flag']
  #allocation4 [shape = 'u32[0]{0}', space=smem, size = 0, offset = 0, fixed_abs, tag = 'smem constant byte address 0x0 - null']
  #allocation5 [shape = 's32[]', space=sflag, size = 0x4, offset = 0, fixed_abs, tag = 'sflag constant byte address 0x0 - dummy sync flag']
  #allocation6 [shape = 'u32[0]{0}', space=smem, size = 0, offset = 0, fixed_abs, tag = 'smem constant byte address 0x0 - null']
  %s0 = inlined_call_operand.hbm [shape: f32[2,1024], index: 0, kind: input, shape index: {}]
  %s1 = inlined_call_operand.hbm [shape: f32[2,1024], index: 1, kind: input, shape index: {}]
  %s2 = inlined_call_operand.hbm [shape: f32[2,2048], index: 2, kind: output, shape index: {}]
  %s3 = sld [smem:[#allocation0]]
  $region2: #{tpu_custom_call.1} parent=0
    _
  %s5 = ssub.s32 1, %s3
  %s6 = scalar_select 0, %s5, %s3
  %s8 = sshll.u32 1, 14
  %s9 = sxor.u32 4294967295, %s8
  %s11 = sshll.u32 %s0, 4
  %s12 = int_to_ptr.hbm [resolvable:$true] %s11
  %s13 = sshll.u32 %s2, 4
  %s14 = int_to_ptr.hbm [resolvable:$true] %s13
  %17 = dma.general %s12, 256, %s14, [#allocation2], [#allocation3], [#allocation4], 0, 0
  %s18 = scalar_lea.hbm %s2, 16
  %s19 = scalar_lea.sflag [#allocation2], 1
  %s21 = sshll.u32 1, 14
  %s22 = sxor.u32 4294967295, %s21
  %s24 = sshll.u32 %s1, 4
  %s25 = int_to_ptr.hbm [resolvable:$true] %s24
  %s26 = sshll.u32 %s18, 4
  %s27 = int_to_ptr.hbm [resolvable:$true] %s26
  %30 = dma.general %s25, 256, %s27, %s19, [#allocation5], [#allocation6], 0, 0
  %s31 = smul.u32 2, 1
  %s32 = smul.u32 %s31, 8
  %s33 = sshll.u32 %s32, 4
  %34 = dma.done [#allocation2], %s33
  %s35 = sshll.u32 %s32, 4
  %36 = dma.done %s19, %s35
  %37 = vsyncmov [#allocation2]
  %s38 = vpop.sfrf %37
  %p39 = scmp.eq.s32.totalorder %s38, 0
  %p40 = pneg %p39
  %42 = shalt.err (%p40)
  %s43 = scalar_lea.sflag [#allocation2], 1
  %44 = vsyncmov %s43
  %s45 = vpop.sfrf %44
  %p46 = scmp.eq.s32.totalorder %s45, 0
  %p47 = pneg %p46
  %49 = shalt.err (%p47)

</llo_original>
